<compile_context>
chip_gen: v5e
topology: v5e:2x2
jax: 0.10.0
libtpu: 0.0.40
codegen_flags: <defaults>
</compile_context>

<pallas_src>
import functools

import jax
import jax.numpy as jnp
from jax.experimental import pallas as pl
from jax.experimental.pallas import tpu as pltpu


def _bottleneck_kernel(x_ref, w1t_ref, b1_ref, w2f_ref, b2_ref, col_ref,
                       o_ref, *, H, W, add):
    """One block of Bn images per grid step; everything stays in VMEM.

    x_ref:   (Bn, C1, H*W)  input, channels-first, pixels on the lane axis
    w1t_ref: (c_, C1)       cv1 1x1 weight, BN-folded, transposed, bf16
    b1_ref:  (c_, 1)        cv1 folded BN bias, f32
    w2f_ref: (C2, 9*c_)     cv2 3x3 weight, BN-folded, K = tap-major * c_, bf16
    b2_ref:  (C2, 1)        cv2 folded BN bias, f32
    col_ref: (1, H*W)       int32 column index of every flattened pixel
    o_ref:   (Bn, C2, H*W)  output (caller dtype)
    """
    HW = H * W
    Bn = x_ref.shape[0]

    w1t = w1t_ref[...]                                     # bf16, resident
    w2f = w2f_ref[...]                                     # bf16, resident
    b1 = b1_ref[...]                                       # f32
    b2 = b2_ref[...]                                       # f32

    # Per-tap validity masks, built once per grid step (cheap VPU filler).
    # Row conditions need only the flat pixel index; column conditions use
    # the tiny precomputed column-index vector.
    pix = jax.lax.broadcasted_iota(jnp.int32, (1, HW), 1)  # (1, HW)
    col = col_ref[...]                                     # (1, HW)
    offsets, valids = [], []
    for oy in (-1, 0, 1):
        for ox in (-1, 0, 1):
            offsets.append(oy * W + ox)
            cond = None
            if oy == -1:
                cond = pix >= W
            elif oy == 1:
                cond = pix < HW - W
            if ox == -1:
                c = col >= 1
                cond = c if cond is None else cond & c
            elif ox == 1:
                c = col <= W - 2
                cond = c if cond is None else cond & c
            valids.append(cond)                            # None for center tap

    for b in range(Bn):                 # static unroll over images of the block
        x = x_ref[b]                                       # (C1, HW)

        # ---- cv1: 1x1 conv (+ folded BN) + SiLU --------------------------
        # bf16 MXU operands, f32 accumulation / epilogue.
        h = jnp.dot(w1t, x.astype(jnp.bfloat16),
                    preferred_element_type=jnp.float32)    # (c_, HW)
        h = h + b1
        h = h * jax.nn.sigmoid(h)                          # SiLU (EUP)

        # ---- cv2: 3x3 conv (pad=1, stride=1) as ONE K-fused MXU matmul ----
        # Tap (oy, ox) of output pixel p is input pixel p + oy*W + ox:
        # an aligned lane rotation of h (XLU) with wrap positions zeroed.
        taps = []
        for s, valid in zip(offsets, valids):
            if s == 0:
                taps.append(h)
            else:
                tap = pltpu.roll(h, shift=(-s) % HW, axis=1)
                taps.append(jnp.where(valid, tap, 0.0))
        stack = jnp.concatenate(taps, axis=0)              # (9*c_, HW)

        y = jnp.dot(w2f, stack.astype(jnp.bfloat16),
                    preferred_element_type=jnp.float32)    # (C2, HW)
        y = y + b2
        y = y * jax.nn.sigmoid(y)                          # SiLU
        if add:                                            # shortcut (c1 == c2)
            y = y + x.astype(jnp.float32)
        o_ref[b] = y.astype(o_ref.dtype)                   # lane-dense store


def _fold_bn(gamma, beta, mean, var, eps=1e-5):
    s = gamma / jnp.sqrt(var + eps)
    return s, beta - mean * s


def bottleneck_forward(x_nchw, params, *, shortcut=True, images_per_step=8):
    """x_nchw: (N, C1, H, W) -> (N, C2, H, W), same semantics as the module."""
    N, C1, H, W = x_nchw.shape
    HW = H * W
    w1 = params["w1"]                              # (C1, c_)
    w2 = params["w2"]                              # (3, 3, c_, C2)  HWIO
    c_ = w1.shape[1]
    C2 = w2.shape[3]
    add = bool(shortcut and C1 == C2)

    # Fold BN (running stats) into conv weights / biases at trace time.
    # Weights go to bf16 for the MXU; biases stay f32 for the epilogue.
    s1, b1 = _fold_bn(*params["bn1"])
    s2, b2 = _fold_bn(*params["bn2"])
    w1t = (w1 * s1[None, :]).T.astype(jnp.bfloat16)                  # (c_, C1)
    w2f = jnp.transpose((w2 * s2[None, None, None, :]).reshape(9, c_, C2),
                        (2, 0, 1)).reshape(C2, 9 * c_)               # tap-major K
    w2f = w2f.astype(jnp.bfloat16)
    b1c = b1.reshape(c_, 1).astype(jnp.float32)
    b2c = b2.reshape(C2, 1).astype(jnp.float32)

    # Tiny column-index vector (replaces the old (9, HW) f32 mask DMA).
    col_idx = (jnp.arange(HW, dtype=jnp.int32) % W).reshape(1, HW)

    # Several images per grid step: amortizes per-step overhead (~0.35 us)
    # and enlarges DMA blocks.
    Bn = max(1, min(images_per_step, N))
    while N % Bn:
        Bn -= 1

    # Keep the caller's dtype in HBM (no f32 up-cast round trip).
    x2d = x_nchw.reshape(N, C1, HW)                        # free reshape

    # Raise scoped VMEM above the 16/32 MiB defaults (headroom for larger
    # image blocks) while staying under v7x's 64 MiB physical VMEM.
    io_bytes = Bn * HW * (C1 + C2) * x2d.dtype.itemsize
    vmem_limit = int(min(64 * 1024 * 1024,
                         max(32 * 1024 * 1024, 8 * io_bytes)))

    out2d = pl.pallas_call(
        functools.partial(_bottleneck_kernel, H=H, W=W, add=add),
        out_shape=jax.ShapeDtypeStruct((N, C2, HW), x2d.dtype),
        grid_spec=pltpu.PrefetchScalarGridSpec(
            num_scalar_prefetch=0,
            grid=(N // Bn,),
            in_specs=[
                pl.BlockSpec((Bn, C1, HW), lambda n: (n, 0, 0)),   # x block
                pl.BlockSpec((c_, C1), lambda n: (0, 0)),          # resident
                pl.BlockSpec((c_, 1), lambda n: (0, 0)),
                pl.BlockSpec((C2, 9 * c_), lambda n: (0, 0)),
                pl.BlockSpec((C2, 1), lambda n: (0, 0)),
                pl.BlockSpec((1, HW), lambda n: (0, 0)),           # col index
            ],
            out_specs=pl.BlockSpec((Bn, C2, HW), lambda n: (n, 0, 0)),
        ),
        compiler_params=pltpu.CompilerParams(
            dimension_semantics=("parallel",),
            vmem_limit_bytes=vmem_limit),
    )(x2d, w1t, b1c, w2f, b2c, col_idx)

    return out2d.reshape(N, C2, H, W)


# ----------------------------------------------------------------------------
# Deterministic parameters + pure-JAX reference for a correctness check.
# ----------------------------------------------------------------------------
def init_params(key, c1, c2, e=0.5):
    c_ = int(c2 * e)
    ks = jax.random.split(key, 10)

    def bn_params(c, k0, k1, k2, k3):
        gamma = 1.0 + 0.1 * jax.random.normal(k0, (c,), jnp.float32)
        beta = 0.1 * jax.random.normal(k1, (c,), jnp.float32)
        mean = 0.1 * jax.random.normal(k2, (c,), jnp.float32)
        var = 1.0 + 0.1 * jax.random.uniform(k3, (c,), jnp.float32)
        return (gamma, beta, mean, var)

    return {
        "w1": 0.25 * jax.random.normal(ks[0], (c1, c_), jnp.float32),
        "bn1": bn_params(c_, ks[1], ks[2], ks[3], ks[4]),
        "w2": 0.25 * jax.random.normal(ks[5], (3, 3, c_, c2), jnp.float32),
        "bn2": bn_params(c2, ks[6], ks[7], ks[8], ks[9]),
    }


def ref_forward(x_nchw, params, *, shortcut=True, eps=1e-5):
    x = jnp.transpose(x_nchw, (0, 2, 3, 1)).astype(jnp.float32)   # NHWC

    def conv_bn_silu(v, w, bn):
        gamma, beta, mean, var = bn
        y = jax.lax.conv_general_dilated(
            v, w, (1, 1), "SAME",
            dimension_numbers=("NHWC", "HWIO", "NHWC"),
            precision=jax.lax.Precision.HIGHEST)
        s = gamma / jnp.sqrt(var + eps)
        y = y * s + (beta - mean * s)
        return y * jax.nn.sigmoid(y)

    h = conv_bn_silu(x, params["w1"][None, None], params["bn1"])
    y = conv_bn_silu(h, params["w2"], params["bn2"])
    if shortcut and x.shape[-1] == y.shape[-1]:
        y = y + x
    return jnp.transpose(y, (0, 3, 1, 2))


if __name__ == "__main__":
    key = jax.random.PRNGKey(0)
    kx, kp = jax.random.split(key)

    # Small shapes; c1 == c2 so the shortcut path of Bottleneck is exercised.
    N, C1, C2, H, W = 2, 8, 8, 16, 16
    x = jax.random.normal(kx, (N, C1, H, W), jnp.float32)
    params = init_params(kp, C1, C2, e=0.5)

    out = jax.block_until_ready(bottleneck_forward(x, params))
    assert out.shape == (N, C2, H, W)

    ref = jax.block_until_ready(ref_forward(x, params))
    # bf16 MXU operands (f32 accumulation) -> ~1e-2-level rounding vs the
    # HIGHEST-precision f32 reference convolution.
    err = float(jnp.max(jnp.abs(out - ref)))
    assert err < 8e-2, f"mismatch vs reference: max abs err = {err}"

    print("KERNEL_OK")
</pallas_src>

<mosaic_0001>
module attributes {stable_mosaic.version = 11 : i64} {
  func.func @_bottleneck_kernel(%arg0: i32, %arg1: memref<2x8x256xf32, #tpu.memory_space<vmem>>, %arg2: memref<4x8xbf16, #tpu.memory_space<vmem>>, %arg3: memref<4x1xf32, #tpu.memory_space<vmem>>, %arg4: memref<8x36xbf16, #tpu.memory_space<vmem>>, %arg5: memref<8x1xf32, #tpu.memory_space<vmem>>, %arg6: memref<1x256xi32, #tpu.memory_space<vmem>>, %arg7: memref<2x8x256xf32, #tpu.memory_space<vmem>>) attributes {dimension_semantics = [#tpu.dimension_semantics<parallel>], iteration_bounds = array<i64: 1>, scalar_prefetch = 0 : i64, scratch_operands = 0 : i64, tpu.core_type = #tpu.core_type<tc>, window_params = [{transform_indices = @transform_0, window_bounds = array<i64: 2, 8, 256>}, {pipeline_mode = #tpu.pipeline_mode<synchronous>, transform_indices = @transform_1, window_bounds = array<i64: 4, 8>}, {pipeline_mode = #tpu.pipeline_mode<synchronous>, transform_indices = @transform_2, window_bounds = array<i64: 4, 1>}, {pipeline_mode = #tpu.pipeline_mode<synchronous>, transform_indices = @transform_3, window_bounds = array<i64: 8, 36>}, {pipeline_mode = #tpu.pipeline_mode<synchronous>, transform_indices = @transform_4, window_bounds = array<i64: 8, 1>}, {pipeline_mode = #tpu.pipeline_mode<synchronous>, transform_indices = @transform_5, window_bounds = array<i64: 1, 256>}, {transform_indices = @transform_6, window_bounds = array<i64: 2, 8, 256>}]} {
    %c0 = arith.constant 0 : index
    %c0_0 = arith.constant 0 : index
    %0 = vector.load %arg2[%c0, %c0_0] : memref<4x8xbf16, #tpu.memory_space<vmem>>, vector<4x8xbf16>
    %c0_1 = arith.constant 0 : index
    %c0_2 = arith.constant 0 : index
    %1 = vector.load %arg4[%c0_1, %c0_2] : memref<8x36xbf16, #tpu.memory_space<vmem>>, vector<8x36xbf16>
    %c0_3 = arith.constant 0 : index
    %c0_4 = arith.constant 0 : index
    %2 = vector.load %arg3[%c0_3, %c0_4] : memref<4x1xf32, #tpu.memory_space<vmem>>, vector<4x1xf32>
    %c0_5 = arith.constant 0 : index
    %c0_6 = arith.constant 0 : index
    %3 = vector.load %arg5[%c0_5, %c0_6] : memref<8x1xf32, #tpu.memory_space<vmem>>, vector<8x1xf32>
    %4 = tpu.iota {dimensions = array<i32: 1>} : vector<1x256xi32>
    %c0_7 = arith.constant 0 : index
    %c0_8 = arith.constant 0 : index
    %5 = vector.load %arg6[%c0_7, %c0_8] : memref<1x256xi32, #tpu.memory_space<vmem>>, vector<1x256xi32>
    %c16_i32 = arith.constant 16 : i32
    %6 = vector.broadcast %c16_i32 : i32 to vector<1x256xi32>
    %7 = arith.cmpi sge, %4, %6 : vector<1x256xi32>
    %c1_i32 = arith.constant 1 : i32
    %8 = vector.broadcast %c1_i32 : i32 to vector<1x256xi32>
    %9 = arith.cmpi sge, %5, %8 : vector<1x256xi32>
    %10 = arith.andi %7, %9 : vector<1x256xi1>
    %c16_i32_9 = arith.constant 16 : i32
    %11 = vector.broadcast %c16_i32_9 : i32 to vector<1x256xi32>
    %12 = arith.cmpi sge, %4, %11 : vector<1x256xi32>
    %c16_i32_10 = arith.constant 16 : i32
    %13 = vector.broadcast %c16_i32_10 : i32 to vector<1x256xi32>
    %14 = arith.cmpi sge, %4, %13 : vector<1x256xi32>
    %c14_i32 = arith.constant 14 : i32
    %15 = vector.broadcast %c14_i32 : i32 to vector<1x256xi32>
    %16 = arith.cmpi sle, %5, %15 : vector<1x256xi32>
    %17 = arith.andi %14, %16 : vector<1x256xi1>
    %c1_i32_11 = arith.constant 1 : i32
    %18 = vector.broadcast %c1_i32_11 : i32 to vector<1x256xi32>
    %19 = arith.cmpi sge, %5, %18 : vector<1x256xi32>
    %c14_i32_12 = arith.constant 14 : i32
    %20 = vector.broadcast %c14_i32_12 : i32 to vector<1x256xi32>
    %21 = arith.cmpi sle, %5, %20 : vector<1x256xi32>
    %c240_i32 = arith.constant 240 : i32
    %22 = vector.broadcast %c240_i32 : i32 to vector<1x256xi32>
    %23 = arith.cmpi slt, %4, %22 : vector<1x256xi32>
    %c1_i32_13 = arith.constant 1 : i32
    %24 = vector.broadcast %c1_i32_13 : i32 to vector<1x256xi32>
    %25 = arith.cmpi sge, %5, %24 : vector<1x256xi32>
    %26 = arith.andi %23, %25 : vector<1x256xi1>
    %c240_i32_14 = arith.constant 240 : i32
    %27 = vector.broadcast %c240_i32_14 : i32 to vector<1x256xi32>
    %28 = arith.cmpi slt, %4, %27 : vector<1x256xi32>
    %c240_i32_15 = arith.constant 240 : i32
    %29 = vector.broadcast %c240_i32_15 : i32 to vector<1x256xi32>
    %30 = arith.cmpi slt, %4, %29 : vector<1x256xi32>
    %c14_i32_16 = arith.constant 14 : i32
    %31 = vector.broadcast %c14_i32_16 : i32 to vector<1x256xi32>
    %32 = arith.cmpi sle, %5, %31 : vector<1x256xi32>
    %33 = arith.andi %30, %32 : vector<1x256xi1>
    %c0_17 = arith.constant 0 : index
    %c0_18 = arith.constant 0 : index
    %c0_19 = arith.constant 0 : index
    %34 = vector.load %arg1[%c0_17, %c0_18, %c0_19] : memref<2x8x256xf32, #tpu.memory_space<vmem>>, vector<1x8x256xf32>
    %35 = vector.shape_cast %34 : vector<1x8x256xf32> to vector<8x256xf32>
    %36 = arith.truncf %35 : vector<8x256xf32> to vector<8x256xbf16>
    %cst = arith.constant dense<0.000000e+00> : vector<4x256xf32>
    %37 = tpu.matmul %0, %36, %cst {dimension_numbers = #tpu.dot_dimension_numbers<[1], [0], [0], [1], [0, 0, 1, 1], [], []>} : vector<4x8xbf16>, vector<8x256xbf16>, vector<4x256xf32> -> vector<4x256xf32>
    %38 = vector.broadcast %2 : vector<4x1xf32> to vector<4x256xf32>
    %39 = arith.addf %37, %38 : vector<4x256xf32>
    %40 = arith.negf %39 : vector<4x256xf32>
    %41 = math.exp %40 : vector<4x256xf32>
    %cst_20 = arith.constant 1.000000e+00 : f32
    %42 = vector.broadcast %cst_20 : f32 to vector<4x256xf32>
    %43 = arith.addf %42, %41 : vector<4x256xf32>
    %44 = arith.divf %42, %43 : vector<4x256xf32>
    %45 = arith.mulf %39, %44 : vector<4x256xf32>
    %c17_i32 = arith.constant 17 : i32
    %46 = tpu.dynamic_rotate %45 by %c17_i32 dim 1 : vector<4x256xf32>, i32 -> vector<4x256xf32>
    %cst_21 = arith.constant 0.000000e+00 : f32
    %47 = vector.shape_cast %10 : vector<1x256xi1> to vector<1x256xi1>
    %48 = vector.broadcast %47 : vector<1x256xi1> to vector<4x256xi1>
    %49 = vector.broadcast %cst_21 : f32 to vector<4x256xf32>
    %50 = arith.select %48, %46, %49 : vector<4x256xi1>, vector<4x256xf32>
    %c16_i32_22 = arith.constant 16 : i32
    %51 = tpu.dynamic_rotate %45 by %c16_i32_22 dim 1 : vector<4x256xf32>, i32 -> vector<4x256xf32>
    %cst_23 = arith.constant 0.000000e+00 : f32
    %52 = vector.shape_cast %12 : vector<1x256xi1> to vector<1x256xi1>
    %53 = vector.broadcast %52 : vector<1x256xi1> to vector<4x256xi1>
    %54 = vector.broadcast %cst_23 : f32 to vector<4x256xf32>
    %55 = arith.select %53, %51, %54 : vector<4x256xi1>, vector<4x256xf32>
    %c15_i32 = arith.constant 15 : i32
    %56 = tpu.dynamic_rotate %45 by %c15_i32 dim 1 : vector<4x256xf32>, i32 -> vector<4x256xf32>
    %cst_24 = arith.constant 0.000000e+00 : f32
    %57 = vector.shape_cast %17 : vector<1x256xi1> to vector<1x256xi1>
    %58 = vector.broadcast %57 : vector<1x256xi1> to vector<4x256xi1>
    %59 = vector.broadcast %cst_24 : f32 to vector<4x256xf32>
    %60 = arith.select %58, %56, %59 : vector<4x256xi1>, vector<4x256xf32>
    %c1_i32_25 = arith.constant 1 : i32
    %61 = tpu.dynamic_rotate %45 by %c1_i32_25 dim 1 : vector<4x256xf32>, i32 -> vector<4x256xf32>
    %cst_26 = arith.constant 0.000000e+00 : f32
    %62 = vector.shape_cast %19 : vector<1x256xi1> to vector<1x256xi1>
    %63 = vector.broadcast %62 : vector<1x256xi1> to vector<4x256xi1>
    %64 = vector.broadcast %cst_26 : f32 to vector<4x256xf32>
    %65 = arith.select %63, %61, %64 : vector<4x256xi1>, vector<4x256xf32>
    %c255_i32 = arith.constant 255 : i32
    %66 = tpu.dynamic_rotate %45 by %c255_i32 dim 1 : vector<4x256xf32>, i32 -> vector<4x256xf32>
    %cst_27 = arith.constant 0.000000e+00 : f32
    %67 = vector.shape_cast %21 : vector<1x256xi1> to vector<1x256xi1>
    %68 = vector.broadcast %67 : vector<1x256xi1> to vector<4x256xi1>
    %69 = vector.broadcast %cst_27 : f32 to vector<4x256xf32>
    %70 = arith.select %68, %66, %69 : vector<4x256xi1>, vector<4x256xf32>
    %c241_i32 = arith.constant 241 : i32
    %71 = tpu.dynamic_rotate %45 by %c241_i32 dim 1 : vector<4x256xf32>, i32 -> vector<4x256xf32>
    %cst_28 = arith.constant 0.000000e+00 : f32
    %72 = vector.shape_cast %26 : vector<1x256xi1> to vector<1x256xi1>
    %73 = vector.broadcast %72 : vector<1x256xi1> to vector<4x256xi1>
    %74 = vector.broadcast %cst_28 : f32 to vector<4x256xf32>
    %75 = arith.select %73, %71, %74 : vector<4x256xi1>, vector<4x256xf32>
    %c240_i32_29 = arith.constant 240 : i32
    %76 = tpu.dynamic_rotate %45 by %c240_i32_29 dim 1 : vector<4x256xf32>, i32 -> vector<4x256xf32>
    %cst_30 = arith.constant 0.000000e+00 : f32
    %77 = vector.shape_cast %28 : vector<1x256xi1> to vector<1x256xi1>
    %78 = vector.broadcast %77 : vector<1x256xi1> to vector<4x256xi1>
    %79 = vector.broadcast %cst_30 : f32 to vector<4x256xf32>
    %80 = arith.select %78, %76, %79 : vector<4x256xi1>, vector<4x256xf32>
    %c239_i32 = arith.constant 239 : i32
    %81 = tpu.dynamic_rotate %45 by %c239_i32 dim 1 : vector<4x256xf32>, i32 -> vector<4x256xf32>
    %cst_31 = arith.constant 0.000000e+00 : f32
    %82 = vector.shape_cast %33 : vector<1x256xi1> to vector<1x256xi1>
    %83 = vector.broadcast %82 : vector<1x256xi1> to vector<4x256xi1>
    %84 = vector.broadcast %cst_31 : f32 to vector<4x256xf32>
    %85 = arith.select %83, %81, %84 : vector<4x256xi1>, vector<4x256xf32>
    %86 = tpu.concatenate %50, %55, %60, %65, %45, %70, %75, %80, %85 in 0 : vector<4x256xf32>, vector<4x256xf32>, vector<4x256xf32>, vector<4x256xf32>, vector<4x256xf32>, vector<4x256xf32>, vector<4x256xf32>, vector<4x256xf32>, vector<4x256xf32> -> vector<36x256xf32>
    %87 = arith.truncf %86 : vector<36x256xf32> to vector<36x256xbf16>
    %cst_32 = arith.constant dense<0.000000e+00> : vector<8x256xf32>
    %88 = tpu.matmul %1, %87, %cst_32 {dimension_numbers = #tpu.dot_dimension_numbers<[1], [0], [0], [1], [0, 0, 1, 1], [], []>} : vector<8x36xbf16>, vector<36x256xbf16>, vector<8x256xf32> -> vector<8x256xf32>
    %89 = vector.broadcast %3 : vector<8x1xf32> to vector<8x256xf32>
    %90 = arith.addf %88, %89 : vector<8x256xf32>
    %91 = arith.negf %90 : vector<8x256xf32>
    %92 = math.exp %91 : vector<8x256xf32>
    %cst_33 = arith.constant 1.000000e+00 : f32
    %93 = vector.broadcast %cst_33 : f32 to vector<8x256xf32>
    %94 = arith.addf %93, %92 : vector<8x256xf32>
    %95 = arith.divf %93, %94 : vector<8x256xf32>
    %96 = arith.mulf %90, %95 : vector<8x256xf32>
    %97 = arith.addf %96, %35 : vector<8x256xf32>
    %c0_34 = arith.constant 0 : index
    %c0_35 = arith.constant 0 : index
    %c0_36 = arith.constant 0 : index
    %98 = vector.load %arg7[%c0_34, %c0_35, %c0_36] : memref<2x8x256xf32, #tpu.memory_space<vmem>>, vector<1x8x256xf32>
    %99 = vector.shape_cast %98 : vector<1x8x256xf32> to vector<8x256xf32>
    %100 = vector.shape_cast %97 : vector<8x256xf32> to vector<1x8x256xf32>
    tpu.vector_store %arg7[%c0_34, %c0_35, %c0_36], %100 {strides = array<i32>} : memref<2x8x256xf32, #tpu.memory_space<vmem>>, vector<1x8x256xf32>,
    %c1 = arith.constant 1 : index
    %c0_37 = arith.constant 0 : index
    %c0_38 = arith.constant 0 : index
    %101 = vector.load %arg1[%c1, %c0_37, %c0_38] : memref<2x8x256xf32, #tpu.memory_space<vmem>>, vector<1x8x256xf32>
    %102 = vector.shape_cast %101 : vector<1x8x256xf32> to vector<8x256xf32>
    %103 = arith.truncf %102 : vector<8x256xf32> to vector<8x256xbf16>
    %cst_39 = arith.constant dense<0.000000e+00> : vector<4x256xf32>
    %104 = tpu.matmul %0, %103, %cst_39 {dimension_numbers = #tpu.dot_dimension_numbers<[1], [0], [0], [1], [0, 0, 1, 1], [], []>} : vector<4x8xbf16>, vector<8x256xbf16>, vector<4x256xf32> -> vector<4x256xf32>
    %105 = vector.broadcast %2 : vector<4x1xf32> to vector<4x256xf32>
    %106 = arith.addf %104, %105 : vector<4x256xf32>
    %107 = arith.negf %106 : vector<4x256xf32>
    %108 = math.exp %107 : vector<4x256xf32>
    %cst_40 = arith.constant 1.000000e+00 : f32
    %109 = vector.broadcast %cst_40 : f32 to vector<4x256xf32>
    %110 = arith.addf %109, %108 : vector<4x256xf32>
    %111 = arith.divf %109, %110 : vector<4x256xf32>
    %112 = arith.mulf %106, %111 : vector<4x256xf32>
    %c17_i32_41 = arith.constant 17 : i32
    %113 = tpu.dynamic_rotate %112 by %c17_i32_41 dim 1 : vector<4x256xf32>, i32 -> vector<4x256xf32>
    %cst_42 = arith.constant 0.000000e+00 : f32
    %114 = vector.shape_cast %10 : vector<1x256xi1> to vector<1x256xi1>
    %115 = vector.broadcast %114 : vector<1x256xi1> to vector<4x256xi1>
    %116 = vector.broadcast %cst_42 : f32 to vector<4x256xf32>
    %117 = arith.select %115, %113, %116 : vector<4x256xi1>, vector<4x256xf32>
    %c16_i32_43 = arith.constant 16 : i32
    %118 = tpu.dynamic_rotate %112 by %c16_i32_43 dim 1 : vector<4x256xf32>, i32 -> vector<4x256xf32>
    %cst_44 = arith.constant 0.000000e+00 : f32
    %119 = vector.shape_cast %12 : vector<1x256xi1> to vector<1x256xi1>
    %120 = vector.broadcast %119 : vector<1x256xi1> to vector<4x256xi1>
    %121 = vector.broadcast %cst_44 : f32 to vector<4x256xf32>
    %122 = arith.select %120, %118, %121 : vector<4x256xi1>, vector<4x256xf32>
    %c15_i32_45 = arith.constant 15 : i32
    %123 = tpu.dynamic_rotate %112 by %c15_i32_45 dim 1 : vector<4x256xf32>, i32 -> vector<4x256xf32>
    %cst_46 = arith.constant 0.000000e+00 : f32
    %124 = vector.shape_cast %17 : vector<1x256xi1> to vector<1x256xi1>
    %125 = vector.broadcast %124 : vector<1x256xi1> to vector<4x256xi1>
    %126 = vector.broadcast %cst_46 : f32 to vector<4x256xf32>
    %127 = arith.select %125, %123, %126 : vector<4x256xi1>, vector<4x256xf32>
    %c1_i32_47 = arith.constant 1 : i32
    %128 = tpu.dynamic_rotate %112 by %c1_i32_47 dim 1 : vector<4x256xf32>, i32 -> vector<4x256xf32>
    %cst_48 = arith.constant 0.000000e+00 : f32
    %129 = vector.shape_cast %19 : vector<1x256xi1> to vector<1x256xi1>
    %130 = vector.broadcast %129 : vector<1x256xi1> to vector<4x256xi1>
    %131 = vector.broadcast %cst_48 : f32 to vector<4x256xf32>
    %132 = arith.select %130, %128, %131 : vector<4x256xi1>, vector<4x256xf32>
    %c255_i32_49 = arith.constant 255 : i32
    %133 = tpu.dynamic_rotate %112 by %c255_i32_49 dim 1 : vector<4x256xf32>, i32 -> vector<4x256xf32>
    %cst_50 = arith.constant 0.000000e+00 : f32
    %134 = vector.shape_cast %21 : vector<1x256xi1> to vector<1x256xi1>
    %135 = vector.broadcast %134 : vector<1x256xi1> to vector<4x256xi1>
    %136 = vector.broadcast %cst_50 : f32 to vector<4x256xf32>
    %137 = arith.select %135, %133, %136 : vector<4x256xi1>, vector<4x256xf32>
    %c241_i32_51 = arith.constant 241 : i32
    %138 = tpu.dynamic_rotate %112 by %c241_i32_51 dim 1 : vector<4x256xf32>, i32 -> vector<4x256xf32>
    %cst_52 = arith.constant 0.000000e+00 : f32
    %139 = vector.shape_cast %26 : vector<1x256xi1> to vector<1x256xi1>
    %140 = vector.broadcast %139 : vector<1x256xi1> to vector<4x256xi1>
    %141 = vector.broadcast %cst_52 : f32 to vector<4x256xf32>
    %142 = arith.select %140, %138, %141 : vector<4x256xi1>, vector<4x256xf32>
    %c240_i32_53 = arith.constant 240 : i32
    %143 = tpu.dynamic_rotate %112 by %c240_i32_53 dim 1 : vector<4x256xf32>, i32 -> vector<4x256xf32>
    %cst_54 = arith.constant 0.000000e+00 : f32
    %144 = vector.shape_cast %28 : vector<1x256xi1> to vector<1x256xi1>
    %145 = vector.broadcast %144 : vector<1x256xi1> to vector<4x256xi1>
    %146 = vector.broadcast %cst_54 : f32 to vector<4x256xf32>
    %147 = arith.select %145, %143, %146 : vector<4x256xi1>, vector<4x256xf32>
    %c239_i32_55 = arith.constant 239 : i32
    %148 = tpu.dynamic_rotate %112 by %c239_i32_55 dim 1 : vector<4x256xf32>, i32 -> vector<4x256xf32>
    %cst_56 = arith.constant 0.000000e+00 : f32
    %149 = vector.shape_cast %33 : vector<1x256xi1> to vector<1x256xi1>
    %150 = vector.broadcast %149 : vector<1x256xi1> to vector<4x256xi1>
    %151 = vector.broadcast %cst_56 : f32 to vector<4x256xf32>
    %152 = arith.select %150, %148, %151 : vector<4x256xi1>, vector<4x256xf32>
    %153 = tpu.concatenate %117, %122, %127, %132, %112, %137, %142, %147, %152 in 0 : vector<4x256xf32>, vector<4x256xf32>, vector<4x256xf32>, vector<4x256xf32>, vector<4x256xf32>, vector<4x256xf32>, vector<4x256xf32>, vector<4x256xf32>, vector<4x256xf32> -> vector<36x256xf32>
    %154 = arith.truncf %153 : vector<36x256xf32> to vector<36x256xbf16>
    %cst_57 = arith.constant dense<0.000000e+00> : vector<8x256xf32>
    %155 = tpu.matmul %1, %154, %cst_57 {dimension_numbers = #tpu.dot_dimension_numbers<[1], [0], [0], [1], [0, 0, 1, 1], [], []>} : vector<8x36xbf16>, vector<36x256xbf16>, vector<8x256xf32> -> vector<8x256xf32>
    %156 = vector.broadcast %3 : vector<8x1xf32> to vector<8x256xf32>
    %157 = arith.addf %155, %156 : vector<8x256xf32>
    %158 = arith.negf %157 : vector<8x256xf32>
    %159 = math.exp %158 : vector<8x256xf32>
    %cst_58 = arith.constant 1.000000e+00 : f32
    %160 = vector.broadcast %cst_58 : f32 to vector<8x256xf32>
    %161 = arith.addf %160, %159 : vector<8x256xf32>
    %162 = arith.divf %160, %161 : vector<8x256xf32>
    %163 = arith.mulf %157, %162 : vector<8x256xf32>
    %164 = arith.addf %163, %102 : vector<8x256xf32>
    %c1_59 = arith.constant 1 : index
    %c0_60 = arith.constant 0 : index
    %c0_61 = arith.constant 0 : index
    %165 = vector.load %arg7[%c1_59, %c0_60, %c0_61] : memref<2x8x256xf32, #tpu.memory_space<vmem>>, vector<1x8x256xf32>
    %166 = vector.shape_cast %165 : vector<1x8x256xf32> to vector<8x256xf32>
    %167 = vector.shape_cast %164 : vector<8x256xf32> to vector<1x8x256xf32>
    tpu.vector_store %arg7[%c1_59, %c0_60, %c0_61], %167 {strides = array<i32>} : memref<2x8x256xf32, #tpu.memory_space<vmem>>, vector<1x8x256xf32>,
    return
  }
  func.func @transform_0(%arg0: i32) -> (i32, i32, i32) {
    %c0_i32 = arith.constant 0 : i32
    %c0_i32_0 = arith.constant 0 : i32
    %c0_i32_1 = arith.constant 0 : i32
    return %arg0, %c0_i32, %c0_i32_0 : i32, i32, i32
  }
  func.func @transform_1(%arg0: i32) -> (i32, i32) {
    %c0_i32 = arith.constant 0 : i32
    %c0_i32_0 = arith.constant 0 : i32
    %c0_i32_1 = arith.constant 0 : i32
    return %c0_i32, %c0_i32_0 : i32, i32
  }
  func.func @transform_2(%arg0: i32) -> (i32, i32) {
    %c0_i32 = arith.constant 0 : i32
    %c0_i32_0 = arith.constant 0 : i32
    %c0_i32_1 = arith.constant 0 : i32
    return %c0_i32, %c0_i32_0 : i32, i32
  }
  func.func @transform_3(%arg0: i32) -> (i32, i32) {
    %c0_i32 = arith.constant 0 : i32
    %c0_i32_0 = arith.constant 0 : i32
    %c0_i32_1 = arith.constant 0 : i32
    return %c0_i32, %c0_i32_0 : i32, i32
  }
  func.func @transform_4(%arg0: i32) -> (i32, i32) {
    %c0_i32 = arith.constant 0 : i32
    %c0_i32_0 = arith.constant 0 : i32
    %c0_i32_1 = arith.constant 0 : i32
    return %c0_i32, %c0_i32_0 : i32, i32
  }
  func.func @transform_5(%arg0: i32) -> (i32, i32) {
    %c0_i32 = arith.constant 0 : i32
    %c0_i32_0 = arith.constant 0 : i32
    %c0_i32_1 = arith.constant 0 : i32
    return %c0_i32, %c0_i32_0 : i32, i32
  }
  func.func @transform_6(%arg0: i32) -> (i32, i32, i32) {
    %c0_i32 = arith.constant 0 : i32
    %c0_i32_0 = arith.constant 0 : i32
    %c0_i32_1 = arith.constant 0 : i32
    return %arg0, %c0_i32, %c0_i32_0 : i32, i32, i32
  }
}

</mosaic_0001>

<llo_original>
// kernel: tpu_custom_call.1
$region0: #{tpu_custom_call.1}
  #allocation0 [shape = 'u32[]', space=smem, size = 0x4, offset = 0x4, fixed_abs, tag = 'smem constant byte address 0x4 - core index']
  #allocation1 [shape = 'u32[72,128]{1,0:T(1,128)}', space=vmem, size = 0x9000, scoped, tag = 'internal scratch']
  %s0 = inlined_call_operand.hbm [shape: f32[2,8,256], index: 0, kind: input, shape index: {}]
  %s1 = inlined_call_operand.vmem [shape: bf16[4,8], index: 1, kind: input, shape index: {}]
  %s2 = inlined_call_operand.vmem [shape: f32[4,1], index: 2, kind: input, shape index: {}]
  %s3 = inlined_call_operand.vmem [shape: bf16[8,36], index: 3, kind: input, shape index: {}]
  %s4 = inlined_call_operand.vmem [shape: f32[8,1], index: 4, kind: input, shape index: {}]
  %s5 = inlined_call_operand.vmem [shape: s32[1,256], index: 5, kind: input, shape index: {}]
  %s6 = inlined_call_operand.hbm [shape: f32[2,8,256], index: 6, kind: output, shape index: {}]
  %s7 = sld [smem:[#allocation0]]
  $region38: #{tpu_custom_call.1} parent=0
    _
  %s9 = ssub.s32 1, %s7
  %s10 = scalar_select 0, %s9, %s7
  $region1: #{tpu_custom_call.1} parent=0
    #allocation2 [shape = 'u8[16384]{0}', space=vmem, size = 0x4000, scoped, tag = 'input window, operand 0, single buffered']
    #allocation3 [shape = 's32[1]{0}', space=sflag, size = 0x4, scoped, tag = 'scoped memory for tpu_custom_call.1']
    #allocation4 [shape = 's32[1]{0}', space=sflag, size = 0x4, scoped, tag = 'scoped memory for tpu_custom_call.1']
    #allocation5 [shape = 'u8[16384]{0}', space=vmem, size = 0x4000, scoped, tag = 'output window, operand 0, single buffered']
    %11 = vsyncpa [#allocation3], 0
    %12 = vsyncpa [#allocation4], 0
    // Predicated region
    $region2: #{tpu_custom_call.1} parent=1 // pred_check
      _
    $region3: #{tpu_custom_call.1} parent=1 // pred_check_branch
      %14 = sbr.rel (0) target = $region5
    $region4: #{tpu_custom_call.1} parent=1 // pred_region
      %16 = vsyncadd [#allocation3], 0
      %s17 = sshll.u32 %s0, 4
      %s18 = int_to_ptr.hbm [resolvable:$true] %s17
      %s19 = sshll.u32 [#allocation2], 4
      %s20 = int_to_ptr.vmem [resolvable:$true] %s19
      %25 = dma.hbm_to_vmem [thread:$0]  %s18, 512, %s20, [#allocation3], 256, 256, 16
    $region5: #{tpu_custom_call.1} parent=1 // pred_fallthru
      _
    // Predicated region
    $region6: #{tpu_custom_call.1} parent=1 // pred_check
      _
    $region7: #{tpu_custom_call.1} parent=1 // pred_check_branch
      %27 = sbr.rel (0) target = $region9
    $region8: #{tpu_custom_call.1} parent=1 // pred_region
      _
    $region9: #{tpu_custom_call.1} parent=1 // pred_fallthru
      _
    // Predicated region
    $region10: #{tpu_custom_call.1} parent=1 // pred_check
      _
    $region11: #{tpu_custom_call.1} parent=1 // pred_check_branch
      %29 = sbr.rel (0) target = $region13
    $region12: #{tpu_custom_call.1} parent=1 // pred_region
      _
    $region13: #{tpu_custom_call.1} parent=1 // pred_fallthru
      _
    // Predicated region
    $region14: #{tpu_custom_call.1} parent=1 // pred_check
      _
    $region15: #{tpu_custom_call.1} parent=1 // pred_check_branch
      %31 = sbr.rel (0) target = $region17
    $region16: #{tpu_custom_call.1} parent=1 // pred_region
      _
    $region17: #{tpu_custom_call.1} parent=1 // pred_fallthru
      _
    // Predicated region
    $region18: #{tpu_custom_call.1} parent=1 // pred_check
      _
    $region19: #{tpu_custom_call.1} parent=1 // pred_check_branch
      %33 = sbr.rel (0) target = $region21
    $region20: #{tpu_custom_call.1} parent=1 // pred_region
      _
    $region21: #{tpu_custom_call.1} parent=1 // pred_fallthru
      _
    // Predicated region
    $region22: #{tpu_custom_call.1} parent=1 // pred_check
      _
    $region23: #{tpu_custom_call.1} parent=1 // pred_check_branch
      %35 = sbr.rel (0) target = $region25
    $region24: #{tpu_custom_call.1} parent=1 // pred_region
      _
    $region25: #{tpu_custom_call.1} parent=1 // pred_fallthru
      _
    // Predicated region
    $region26: #{tpu_custom_call.1} parent=1 // pred_check
      _
    $region27: #{tpu_custom_call.1} parent=1 // pred_check_branch
      %37 = sbr.rel (0) target = $region29
    $region28: #{tpu_custom_call.1} parent=1 // pred_region
      %39 = dma.done [#allocation3], 512
    $region29: #{tpu_custom_call.1} parent=1 // pred_fallthru
      _
    %v41 = vld [vmem:[%s1] sm:$0x3]
    %v42 = vld [vmem:[%s3] sm:$0xf]
    %v43 = vld [vmem:[%s2] sm:$0xf]
    %v44 = vld [vmem:[%s4] sm:$0xff]
    %v45 = vlaneseq
    %v46 = vand.u32 %v45, 127
    %v47 = vadd.s32 %v46, 128
    %v48 = vld [vmem:[%s5] sm:$0x3]
    %vm49 = vcmp.ge.s32.totalorder %v46, 16
    %vm50 = vcmp.ge.s32.totalorder %v47, 16
    %vm51 = vcmp.ge.s32.totalorder %v48, 1
    %v52 = vsel %vm51, 1, 0
    %v53 = vperm.slane %v52, 0
    %v54 = vperm.slane %v52, 1
    %vm55 = vcmp.ne.s32.totalorder %v53, 0
    %vm56 = vcmp.ne.s32.totalorder %v54, 0
    %vm57 = vmand %vm49, %vm55
    %vm58 = vmand %vm50, %vm56
    %vm59 = vcmp.le.s32.totalorder %v48, 14
    %v60 = vsel %vm59, 1, 0
    %v61 = vperm.slane %v60, 0
    %v62 = vperm.slane %v60, 1
    %vm63 = vcmp.ne.s32.totalorder %v61, 0
    %vm64 = vcmp.ne.s32.totalorder %v62, 0
    %vm65 = vmand %vm49, %vm63
    %vm66 = vmand %vm50, %vm64
    %vm67 = vcmp.lt.s32.totalorder %v46, 240
    %vm68 = vcmp.lt.s32.totalorder %v47, 240
    %vm69 = vmand %vm67, %vm55
    %vm70 = vmand %vm68, %vm56
    %vm71 = vmand %vm67, %vm63
    %vm72 = vmand %vm68, %vm64
    %v73 = vld [vmem:[#allocation2] sm:$0xff]
    %v74 = vld [vmem:[#allocation2 + $0x8] sm:$0xff]
    %v75 = vpack.c.bf16 %v73, %v73
    %v76 = vpack.c.bf16 %v74, %v74
    %78 = vset.pattern.permute.xlu0 0
    %79 = vperm.xlu0 %78, %v43
    %v80 = vpop.permute.xlu0 %79
    %vm82 = vcmask 64512
    %v84 = vsel %vm82, %v41, 0
    %vm86 = vcmask 1043456
    %v88 = vsel %vm86, %v75, 0
    %v91 = vsel %vm86, %v76, 0
    %93 = vmatpush.bf16.msra.mxu0 0
    %94 = vmatpush.bf16.msra.mxu0 0
    %95 = vmatpush.bf16.msra.mxu0 0
    %96 = vmatpush.bf16.msra.mxu0 0
    %97 = vmatpush.bf16.msra.mxu0 0
    %98 = vmatpush.bf16.msra.mxu0 0
    %99 = vmatpush.bf16.msra.mxu0 0
    %100 = vmatpush.bf16.msra.mxu0 %v88
    %101 = vmatmul.bf16.gmra.mxu0 %v84
    %v102 = vpop.f32.mrf.mxu0
    %v103 = vadd.f32 %v80, %v102
    %v104 = vpop.f32.mrf.mxu0
    %105 = vdwg.mxu0
    %106 = vmatpush.bf16.msra.mxu0 0
    %107 = vmatpush.bf16.msra.mxu0 0
    %108 = vmatpush.bf16.msra.mxu0 0
    %109 = vmatpush.bf16.msra.mxu0 0
    %110 = vmatpush.bf16.msra.mxu0 0
    %111 = vmatpush.bf16.msra.mxu0 0
    %112 = vmatpush.bf16.msra.mxu0 0
    %113 = vmatpush.bf16.msra.mxu0 %v91
    %114 = vmatmul.bf16.gmra.mxu0 %v84
    %v115 = vpop.f32.mrf.mxu0
    %v116 = vadd.f32 %v80, %v115
    %v117 = vpop.f32.mrf.mxu0
    %118 = vdwg.mxu0
    %v119 = vxor.u32 %v103, 2147483648
    %v120 = vxor.u32 %v116, 2147483648
    %v121 = vmul.f32 %v119, 1.442695
    %v122 = vpow.pop %v121
    %v123 = vmul.f32 %v120, 1.442695
    %v124 = vpow.pop %v123
    %v125 = vadd.f32 %v122, 1.0
    %v126 = vadd.f32 %v124, 1.0
    %v127 = vrcp.pop %v125
    %v128 = vmul.f32 %v125, %v127
    %v129 = vsub.f32 1.0, %v128
    %v130 = vmul.f32 %v127, %v129
    %v131 = vadd.f32 %v127, %v130
    %vm132 = vweird.f32 %v125
    %vm133 = vweird.f32 %v127
    %vm134 = vmor %vm132, %vm133
    %v135 = vsel %vm134, %v127, %v131
    %v136 = vand.u32 2147483647, %v125
    %vm137 = vcmp.eq.f32.partialorder %v136, 8.507059e+37
    %v138 = vand.u32 %v125, 2147483648
    %v139 = vor.u32 1.1754944e-38, %v138
    %v140 = vsel %vm137, %v139, %v135
    %v141 = vmul.f32 1.0, %v140
    %v142 = vrcp.pop %v126
    %v143 = vmul.f32 %v126, %v142
    %v144 = vsub.f32 1.0, %v143
    %v145 = vmul.f32 %v142, %v144
    %v146 = vadd.f32 %v142, %v145
    %vm147 = vweird.f32 %v126
    %vm148 = vweird.f32 %v142
    %vm149 = vmor %vm147, %vm148
    %v150 = vsel %vm149, %v142, %v146
    %v151 = vand.u32 2147483647, %v126
    %vm152 = vcmp.eq.f32.partialorder %v151, 8.507059e+37
    %v153 = vand.u32 %v126, 2147483648
    %v154 = vor.u32 1.1754944e-38, %v153
    %v155 = vsel %vm152, %v154, %v150
    %v156 = vmul.f32 1.0, %v155
    %v157 = vmul.f32 %v103, %v141
    %v158 = vmul.f32 %v116, %v156
    %159 = vrot.lane.b32.xlu0 %v157, 17
    %v160 = vpop.permute.xlu0 %159
    %161 = vrot.lane.b32.xlu0 %v158, 17
    %v162 = vpop.permute.xlu0 %161
    %vm163 = vcmp.lt.s32.totalorder %v46, 17
    %v164 = vsel %vm163, %v160, %v162
    %v165 = vsel %vm163, %v162, %v160
    %v166 = vsel %vm57, 1, 0
    %v167 = vsel %vm58, 1, 0
    %v168 = vperm.slane %v166, 0
    %v169 = vperm.slane %v167, 0
    %vm170 = vcmp.eq.s32.totalorder %v168, 1
    %vm171 = vcmp.eq.s32.totalorder %v169, 1
    %v172 = vsel %vm170, %v165, 0.0
    %v173 = vsel %vm171, %v164, 0.0
    %174 = vrot.lane.b32.xlu0 %v157, 16
    %v175 = vpop.permute.xlu0 %174
    %176 = vrot.lane.b32.xlu0 %v158, 16
    %v177 = vpop.permute.xlu0 %176
    %vm178 = vcmp.lt.s32.totalorder %v46, 16
    %v179 = vsel %vm178, %v175, %v177
    %v180 = vsel %vm178, %v177, %v175
    %v181 = vsel %vm49, 1, 0
    %v182 = vsel %vm50, 1, 0
    %vm183 = vcmp.eq.s32.totalorder %v181, 1
    %vm184 = vcmp.eq.s32.totalorder %v182, 1
    %v185 = vsel %vm183, %v180, 0.0
    %v186 = vsel %vm184, %v179, 0.0
    %187 = vrot.lane.b32.xlu0 %v157, 15
    %v188 = vpop.permute.xlu0 %187
    %189 = vrot.lane.b32.xlu0 %v158, 15
    %v190 = vpop.permute.xlu0 %189
    %vm191 = vcmp.lt.s32.totalorder %v46, 15
    %v192 = vsel %vm191, %v188, %v190
    %v193 = vsel %vm191, %v190, %v188
    %v194 = vsel %vm65, 1, 0
    %v195 = vsel %vm66, 1, 0
    %v196 = vperm.slane %v194, 0
    %v197 = vperm.slane %v195, 0
    %vm198 = vcmp.eq.s32.totalorder %v196, 1
    %vm199 = vcmp.eq.s32.totalorder %v197, 1
    %v200 = vsel %vm198, %v193, 0.0
    %v201 = vsel %vm199, %v192, 0.0
    %202 = vrot.lane.b32.xlu0 %v157, 1
    %v203 = vpop.permute.xlu0 %202
    %204 = vrot.lane.b32.xlu0 %v158, 1
    %v205 = vpop.permute.xlu0 %204
    %vm206 = vcmp.lt.s32.totalorder %v46, 1
    %v207 = vsel %vm206, %v203, %v205
    %v208 = vsel %vm206, %v205, %v203
    %vm209 = vcmp.eq.s32.totalorder %v53, 1
    %vm210 = vcmp.eq.s32.totalorder %v54, 1
    %v211 = vsel %vm209, %v208, 0.0
    %v212 = vsel %vm210, %v207, 0.0
    %213 = vrot.lane.b32.xlu0 %v157, 127
    %v214 = vpop.permute.xlu0 %213
    %215 = vrot.lane.b32.xlu0 %v158, 127
    %v216 = vpop.permute.xlu0 %215
    %vm217 = vcmp.lt.s32.totalorder %v46, 127
    %v218 = vsel %vm217, %v214, %v216
    %v219 = vsel %vm217, %v216, %v214
    %vm220 = vcmp.eq.s32.totalorder %v61, 1
    %vm221 = vcmp.eq.s32.totalorder %v62, 1
    %v222 = vsel %vm220, %v218, 0.0
    %v223 = vsel %vm221, %v219, 0.0
    %224 = vrot.lane.b32.xlu0 %v157, 113
    %v225 = vpop.permute.xlu0 %224
    %226 = vrot.lane.b32.xlu0 %v158, 113
    %v227 = vpop.permute.xlu0 %226
    %vm228 = vcmp.lt.s32.totalorder %v46, 113
    %v229 = vsel %vm228, %v225, %v227
    %v230 = vsel %vm228, %v227, %v225
    %v231 = vsel %vm69, 1, 0
    %v232 = vsel %vm70, 1, 0
    %v233 = vperm.slane %v231, 0
    %v234 = vperm.slane %v232, 0
    %vm235 = vcmp.eq.s32.totalorder %v233, 1
    %vm236 = vcmp.eq.s32.totalorder %v234, 1
    %v237 = vsel %vm235, %v229, 0.0
    %v238 = vsel %vm236, %v230, 0.0
    %239 = vrot.lane.b32.xlu0 %v157, 112
    %v240 = vpop.permute.xlu0 %239
    %241 = vrot.lane.b32.xlu0 %v158, 112
    %v242 = vpop.permute.xlu0 %241
    %vm243 = vcmp.lt.s32.totalorder %v46, 112
    %v244 = vsel %vm243, %v240, %v242
    %v245 = vsel %vm243, %v242, %v240
    %v246 = vsel %vm67, 1, 0
    %v247 = vsel %vm68, 1, 0
    %vm248 = vcmp.eq.s32.totalorder %v246, 1
    %vm249 = vcmp.eq.s32.totalorder %v247, 1
    %v250 = vsel %vm248, %v244, 0.0
    %v251 = vsel %vm249, %v245, 0.0
    %252 = vrot.lane.b32.xlu0 %v157, 111
    %v253 = vpop.permute.xlu0 %252
    %254 = vrot.lane.b32.xlu0 %v158, 111
    %v255 = vpop.permute.xlu0 %254
    %vm256 = vcmp.lt.s32.totalorder %v46, 111
    %v257 = vsel %vm256, %v253, %v255
    %v258 = vsel %vm256, %v255, %v253
    %v259 = vsel %vm71, 1, 0
    %v260 = vsel %vm72, 1, 0
    %v261 = vperm.slane %v259, 0
    %v262 = vperm.slane %v260, 0
    %vm263 = vcmp.eq.s32.totalorder %v261, 1
    %vm264 = vcmp.eq.s32.totalorder %v262, 1
    %v265 = vsel %vm263, %v257, 0.0
    %v266 = vsel %vm264, %v258, 0.0
    %v269 = vrot.slane %v185, 4
    %v270 = vrot.slane %v186, 4
    %v275 = vrot.slane %v211, 4
    %v276 = vrot.slane %v212, 4
    %v281 = vrot.slane %v222, 4
    %v282 = vrot.slane %v223, 4
    %v287 = vrot.slane %v250, 4
    %v288 = vrot.slane %v251, 4
    %v291 = vsel %vm86, %v172, %v269
    %v292 = vsel %vm86, %v173, %v270
    %v293 = vsel %vm86, %v200, %v275
    %v294 = vsel %vm86, %v201, %v276
    %v295 = vsel %vm86, %v157, %v281
    %v296 = vsel %vm86, %v158, %v282
    %v297 = vsel %vm86, %v237, %v287
    %v298 = vsel %vm86, %v238, %v288
    %v299 = vpack.c.bf16 %v293, %v291
    %v300 = vpack.c.bf16 %v294, %v292
    %v301 = vpack.c.bf16 %v297, %v295
    %v302 = vpack.c.bf16 %v298, %v296
    %v303 = vpack.c.bf16 %v265, %v265
    %v304 = vpack.c.bf16 %v266, %v266
    %306 = vset.pattern.permute.xlu0 0
    %307 = vperm.xlu0 %306, %v44
    %v308 = vpop.permute.xlu0 %307
    %vm310 = vcmask 293888
    %v312 = vsel %vm310, %v42, 0
    %vm314 = vcmask 1041408
    %v316 = vsel %vm314, %v303, 0
    %v319 = vsel %vm314, %v304, 0
    %321 = vmatpush.bf16.msra.mxu0 0
    %322 = vmatpush.bf16.msra.mxu0 0
    %323 = vmatpush.bf16.msra.mxu0 0
    %324 = vmatpush.bf16.msra.mxu0 0
    %325 = vmatpush.bf16.msra.mxu0 0
    %326 = vmatpush.bf16.msra.mxu0 %v316
    %327 = vmatpush.bf16.msra.mxu0 %v301
    %328 = vmatpush.bf16.msra.mxu0 %v299
    %329 = vmatmul.bf16.gmra.mxu0 %v312
    %v330 = vpop.f32.mrf.mxu0
    %v331 = vadd.f32 %v308, %v330
    %v332 = vpop.f32.mrf.mxu0
    %333 = vdwg.mxu0
    %334 = vmatpush.bf16.msra.mxu0 0
    %335 = vmatpush.bf16.msra.mxu0 0
    %336 = vmatpush.bf16.msra.mxu0 0
    %337 = vmatpush.bf16.msra.mxu0 0
    %338 = vmatpush.bf16.msra.mxu0 0
    %339 = vmatpush.bf16.msra.mxu0 %v319
    %340 = vmatpush.bf16.msra.mxu0 %v302
    %341 = vmatpush.bf16.msra.mxu0 %v300
    %342 = vmatmul.bf16.gmra.mxu0 %v312
    %v343 = vpop.f32.mrf.mxu0
    %v344 = vadd.f32 %v308, %v343
    %v345 = vpop.f32.mrf.mxu0
    %346 = vdwg.mxu0
    %v347 = vxor.u32 %v331, 2147483648
    %v348 = vxor.u32 %v344, 2147483648
    %v349 = vmul.f32 %v347, 1.442695
    %v350 = vpow.pop %v349
    %v351 = vmul.f32 %v348, 1.442695
    %v352 = vpow.pop %v351
    %v353 = vadd.f32 %v350, 1.0
    %v354 = vadd.f32 %v352, 1.0
    %v355 = vrcp.pop %v353
    %v356 = vmul.f32 %v353, %v355
    %v357 = vsub.f32 1.0, %v356
    %v358 = vmul.f32 %v355, %v357
    %v359 = vadd.f32 %v355, %v358
    %vm360 = vweird.f32 %v353
    %vm361 = vweird.f32 %v355
    %vm362 = vmor %vm360, %vm361
    %v363 = vsel %vm362, %v355, %v359
    %v364 = vand.u32 2147483647, %v353
    %vm365 = vcmp.eq.f32.partialorder %v364, 8.507059e+37
    %v366 = vand.u32 %v353, 2147483648
    %v367 = vor.u32 1.1754944e-38, %v366
    %v368 = vsel %vm365, %v367, %v363
    %v369 = vmul.f32 1.0, %v368
    %v370 = vrcp.pop %v354
    %v371 = vmul.f32 %v354, %v370
    %v372 = vsub.f32 1.0, %v371
    %v373 = vmul.f32 %v370, %v372
    %v374 = vadd.f32 %v370, %v373
    %vm375 = vweird.f32 %v354
    %vm376 = vweird.f32 %v370
    %vm377 = vmor %vm375, %vm376
    %v378 = vsel %vm377, %v370, %v374
    %v379 = vand.u32 2147483647, %v354
    %vm380 = vcmp.eq.f32.partialorder %v379, 8.507059e+37
    %v381 = vand.u32 %v354, 2147483648
    %v382 = vor.u32 1.1754944e-38, %v381
    %v383 = vsel %vm380, %v382, %v378
    %v384 = vmul.f32 1.0, %v383
    %v385 = vmul.f32 %v331, %v369
    %v386 = vmul.f32 %v344, %v384
    %v387 = vadd.f32 %v385, %v73
    %v388 = vadd.f32 %v386, %v74
    %389 = vst [vmem:[#allocation5] sm:$0xff] %v387
    %390 = vst [vmem:[#allocation5 + $0x8] sm:$0xff] %v388
    %s391 = scalar_lea.vmem [#allocation2], 16
    %v392 = vld [vmem:[%s391] sm:$0xff]
    %v393 = vld [vmem:[%s391 + $0x8] sm:$0xff]
    %v394 = vpack.c.bf16 %v392, %v392
    %v395 = vpack.c.bf16 %v393, %v393
    %v397 = vsel %vm86, %v394, 0
    %v400 = vsel %vm86, %v395, 0
    %402 = vmatpush.bf16.msra.mxu0 0
    %403 = vmatpush.bf16.msra.mxu0 0
    %404 = vmatpush.bf16.msra.mxu0 0
    %405 = vmatpush.bf16.msra.mxu0 0
    %406 = vmatpush.bf16.msra.mxu0 0
    %407 = vmatpush.bf16.msra.mxu0 0
    %408 = vmatpush.bf16.msra.mxu0 0
    %409 = vmatpush.bf16.msra.mxu0 %v397
    %410 = vmatmul.bf16.gmra.mxu0 %v84
    %v411 = vpop.f32.mrf.mxu0
    %v412 = vadd.f32 %v80, %v411
    %v413 = vpop.f32.mrf.mxu0
    %414 = vdwg.mxu0
    %415 = vmatpush.bf16.msra.mxu0 0
    %416 = vmatpush.bf16.msra.mxu0 0
    %417 = vmatpush.bf16.msra.mxu0 0
    %418 = vmatpush.bf16.msra.mxu0 0
    %419 = vmatpush.bf16.msra.mxu0 0
    %420 = vmatpush.bf16.msra.mxu0 0
    %421 = vmatpush.bf16.msra.mxu0 0
    %422 = vmatpush.bf16.msra.mxu0 %v400
    %423 = vmatmul.bf16.gmra.mxu0 %v84
    %v424 = vpop.f32.mrf.mxu0
    %v425 = vadd.f32 %v80, %v424
    %v426 = vpop.f32.mrf.mxu0
    %427 = vdwg.mxu0
    %v428 = vxor.u32 %v412, 2147483648
    %v429 = vxor.u32 %v425, 2147483648
    %v430 = vmul.f32 %v428, 1.442695
    %v431 = vpow.pop %v430
    %v432 = vmul.f32 %v429, 1.442695
    %v433 = vpow.pop %v432
    %v434 = vadd.f32 %v431, 1.0
    %v435 = vadd.f32 %v433, 1.0
    %v436 = vrcp.pop %v434
    %v437 = vmul.f32 %v434, %v436
    %v438 = vsub.f32 1.0, %v437
    %v439 = vmul.f32 %v436, %v438
    %v440 = vadd.f32 %v436, %v439
    %vm441 = vweird.f32 %v434
    %vm442 = vweird.f32 %v436
    %vm443 = vmor %vm441, %vm442
    %v444 = vsel %vm443, %v436, %v440
    %v445 = vand.u32 2147483647, %v434
    %vm446 = vcmp.eq.f32.partialorder %v445, 8.507059e+37
    %v447 = vand.u32 %v434, 2147483648
    %v448 = vor.u32 1.1754944e-38, %v447
    %v449 = vsel %vm446, %v448, %v444
    %v450 = vmul.f32 1.0, %v449
    %v451 = vrcp.pop %v435
    %v452 = vmul.f32 %v435, %v451
    %v453 = vsub.f32 1.0, %v452
    %v454 = vmul.f32 %v451, %v453
    %v455 = vadd.f32 %v451, %v454
    %vm456 = vweird.f32 %v435
    %vm457 = vweird.f32 %v451
    %vm458 = vmor %vm456, %vm457
    %v459 = vsel %vm458, %v451, %v455
    %v460 = vand.u32 2147483647, %v435
    %vm461 = vcmp.eq.f32.partialorder %v460, 8.507059e+37
    %v462 = vand.u32 %v435, 2147483648
    %v463 = vor.u32 1.1754944e-38, %v462
    %v464 = vsel %vm461, %v463, %v459
    %v465 = vmul.f32 1.0, %v464
    %v466 = vmul.f32 %v412, %v450
    %v467 = vmul.f32 %v425, %v465
    %468 = vrot.lane.b32.xlu0 %v466, 17
    %v469 = vpop.permute.xlu0 %468
    %470 = vrot.lane.b32.xlu0 %v467, 17
    %v471 = vpop.permute.xlu0 %470
    %v472 = vsel %vm163, %v469, %v471
    %v473 = vsel %vm163, %v471, %v469
    %v474 = vsel %vm170, %v473, 0.0
    %v475 = vsel %vm171, %v472, 0.0
    %476 = vrot.lane.b32.xlu0 %v466, 16
    %v477 = vpop.permute.xlu0 %476
    %478 = vrot.lane.b32.xlu0 %v467, 16
    %v479 = vpop.permute.xlu0 %478
    %v480 = vsel %vm178, %v477, %v479
    %v481 = vsel %vm178, %v479, %v477
    %v482 = vsel %vm183, %v481, 0.0
    %v483 = vsel %vm184, %v480, 0.0
    %484 = vrot.lane.b32.xlu0 %v466, 15
    %v485 = vpop.permute.xlu0 %484
    %486 = vrot.lane.b32.xlu0 %v467, 15
    %v487 = vpop.permute.xlu0 %486
    %v488 = vsel %vm191, %v485, %v487
    %v489 = vsel %vm191, %v487, %v485
    %v490 = vsel %vm198, %v489, 0.0
    %v491 = vsel %vm199, %v488, 0.0
    %492 = vrot.lane.b32.xlu0 %v466, 1
    %v493 = vpop.permute.xlu0 %492
    %494 = vrot.lane.b32.xlu0 %v467, 1
    %v495 = vpop.permute.xlu0 %494
    %v496 = vsel %vm206, %v493, %v495
    %v497 = vsel %vm206, %v495, %v493
    %v498 = vsel %vm209, %v497, 0.0
    %v499 = vsel %vm210, %v496, 0.0
    %500 = vrot.lane.b32.xlu0 %v466, 127
    %v501 = vpop.permute.xlu0 %500
    %502 = vrot.lane.b32.xlu0 %v467, 127
    %v503 = vpop.permute.xlu0 %502
    %v504 = vsel %vm217, %v501, %v503
    %v505 = vsel %vm217, %v503, %v501
    %v506 = vsel %vm220, %v504, 0.0
    %v507 = vsel %vm221, %v505, 0.0
    %508 = vrot.lane.b32.xlu0 %v466, 113
    %v509 = vpop.permute.xlu0 %508
    %510 = vrot.lane.b32.xlu0 %v467, 113
    %v511 = vpop.permute.xlu0 %510
    %v512 = vsel %vm228, %v509, %v511
    %v513 = vsel %vm228, %v511, %v509
    %v514 = vsel %vm235, %v512, 0.0
    %v515 = vsel %vm236, %v513, 0.0
    %516 = vrot.lane.b32.xlu0 %v466, 112
    %v517 = vpop.permute.xlu0 %516
    %518 = vrot.lane.b32.xlu0 %v467, 112
    %v519 = vpop.permute.xlu0 %518
    %v520 = vsel %vm243, %v517, %v519
    %v521 = vsel %vm243, %v519, %v517
    %v522 = vsel %vm248, %v520, 0.0
    %v523 = vsel %vm249, %v521, 0.0
    %524 = vrot.lane.b32.xlu0 %v466, 111
    %v525 = vpop.permute.xlu0 %524
    %526 = vrot.lane.b32.xlu0 %v467, 111
    %v527 = vpop.permute.xlu0 %526
    %v528 = vsel %vm256, %v525, %v527
    %v529 = vsel %vm256, %v527, %v525
    %v530 = vsel %vm263, %v528, 0.0
    %v531 = vsel %vm264, %v529, 0.0
    %v534 = vrot.slane %v482, 4
    %v535 = vrot.slane %v483, 4
    %v540 = vrot.slane %v498, 4
    %v541 = vrot.slane %v499, 4
    %v546 = vrot.slane %v506, 4
    %v547 = vrot.slane %v507, 4
    %v552 = vrot.slane %v522, 4
    %v553 = vrot.slane %v523, 4
    %v556 = vsel %vm86, %v474, %v534
    %v557 = vsel %vm86, %v475, %v535
    %v558 = vsel %vm86, %v490, %v540
    %v559 = vsel %vm86, %v491, %v541
    %v560 = vsel %vm86, %v466, %v546
    %v561 = vsel %vm86, %v467, %v547
    %v562 = vsel %vm86, %v514, %v552
    %v563 = vsel %vm86, %v515, %v553
    %v564 = vpack.c.bf16 %v558, %v556
    %v565 = vpack.c.bf16 %v559, %v557
    %v566 = vpack.c.bf16 %v562, %v560
    %v567 = vpack.c.bf16 %v563, %v561
    %v568 = vpack.c.bf16 %v530, %v530
    %v569 = vpack.c.bf16 %v531, %v531
    %v571 = vsel %vm314, %v568, 0
    %v574 = vsel %vm314, %v569, 0
    %576 = vmatpush.bf16.msra.mxu0 0
    %577 = vmatpush.bf16.msra.mxu0 0
    %578 = vmatpush.bf16.msra.mxu0 0
    %579 = vmatpush.bf16.msra.mxu0 0
    %580 = vmatpush.bf16.msra.mxu0 0
    %581 = vmatpush.bf16.msra.mxu0 %v571
    %582 = vmatpush.bf16.msra.mxu0 %v566
    %583 = vmatpush.bf16.msra.mxu0 %v564
    %584 = vmatmul.bf16.gmra.mxu0 %v312
    %v585 = vpop.f32.mrf.mxu0
    %v586 = vadd.f32 %v308, %v585
    %v587 = vpop.f32.mrf.mxu0
    %588 = vdwg.mxu0
    %589 = vmatpush.bf16.msra.mxu0 0
    %590 = vmatpush.bf16.msra.mxu0 0
    %591 = vmatpush.bf16.msra.mxu0 0
    %592 = vmatpush.bf16.msra.mxu0 0
    %593 = vmatpush.bf16.msra.mxu0 0
    %594 = vmatpush.bf16.msra.mxu0 %v574
    %595 = vmatpush.bf16.msra.mxu0 %v567
    %596 = vmatpush.bf16.msra.mxu0 %v565
    %597 = vmatmul.bf16.gmra.mxu0 %v312
    %v598 = vpop.f32.mrf.mxu0
    %v599 = vadd.f32 %v308, %v598
    %v600 = vpop.f32.mrf.mxu0
    %601 = vdwg.mxu0
    %v602 = vxor.u32 %v586, 2147483648
    %v603 = vxor.u32 %v599, 2147483648
    %v604 = vmul.f32 %v602, 1.442695
    %v605 = vpow.pop %v604
    %v606 = vmul.f32 %v603, 1.442695
    %v607 = vpow.pop %v606
    %v608 = vadd.f32 %v605, 1.0
    %v609 = vadd.f32 %v607, 1.0
    %v610 = vrcp.pop %v608
    %v611 = vmul.f32 %v608, %v610
    %v612 = vsub.f32 1.0, %v611
    %v613 = vmul.f32 %v610, %v612
    %v614 = vadd.f32 %v610, %v613
    %vm615 = vweird.f32 %v608
    %vm616 = vweird.f32 %v610
    %vm617 = vmor %vm615, %vm616
    %v618 = vsel %vm617, %v610, %v614
    %v619 = vand.u32 2147483647, %v608
    %vm620 = vcmp.eq.f32.partialorder %v619, 8.507059e+37
    %v621 = vand.u32 %v608, 2147483648
    %v622 = vor.u32 1.1754944e-38, %v621
    %v623 = vsel %vm620, %v622, %v618
    %v624 = vmul.f32 1.0, %v623
    %v625 = vrcp.pop %v609
    %v626 = vmul.f32 %v609, %v625
    %v627 = vsub.f32 1.0, %v626
    %v628 = vmul.f32 %v625, %v627
    %v629 = vadd.f32 %v625, %v628
    %vm630 = vweird.f32 %v609
    %vm631 = vweird.f32 %v625
    %vm632 = vmor %vm630, %vm631
    %v633 = vsel %vm632, %v625, %v629
    %v634 = vand.u32 2147483647, %v609
    %vm635 = vcmp.eq.f32.partialorder %v634, 8.507059e+37
    %v636 = vand.u32 %v609, 2147483648
    %v637 = vor.u32 1.1754944e-38, %v636
    %v638 = vsel %vm635, %v637, %v633
    %v639 = vmul.f32 1.0, %v638
    %v640 = vmul.f32 %v586, %v624
    %v641 = vmul.f32 %v599, %v639
    %v642 = vadd.f32 %v640, %v392
    %v643 = vadd.f32 %v641, %v393
    %s644 = scalar_lea.vmem [#allocation5], 16
    %645 = vst [vmem:[%s644] sm:$0xff] %v642
    %646 = vst [vmem:[%s644 + $0x8] sm:$0xff] %v643
    // Predicated region
    $region30: #{tpu_custom_call.1} parent=1 // pred_check
      _
    $region31: #{tpu_custom_call.1} parent=1 // pred_check_branch
      %648 = sbr.rel (0) target = $region33
    $region32: #{tpu_custom_call.1} parent=1 // pred_region
      %650 = vsyncadd [#allocation4], 0
      %s651 = sshll.u32 [#allocation5], 4
      %s652 = int_to_ptr.vmem [resolvable:$true] %s651
      %s653 = sshll.u32 %s6, 4
      %s654 = int_to_ptr.hbm [resolvable:$true] %s653
      %659 = dma.vmem_to_hbm [thread:$0]  %s652, 512, %s654, [#allocation4], 256, 256, 16
    $region33: #{tpu_custom_call.1} parent=1 // pred_fallthru
      _
    // Predicated region
    $region34: #{tpu_custom_call.1} parent=1 // pred_check
      _
    $region35: #{tpu_custom_call.1} parent=1 // pred_check_branch
      %661 = sbr.rel (0) target = $region37
    $region36: #{tpu_custom_call.1} parent=1 // pred_region
      %663 = dma.done [#allocation4], 512
    $region37: #{tpu_custom_call.1} parent=1 // pred_fallthru
      _
    %664 = vsyncpa [#allocation3], 1
    %665 = vsyncpa [#allocation4], 1

</llo_original>
